<compile_context>
chip_gen: v7x
topology: tpu7x:2x2x1
jax: 0.10.0
libtpu: 0.0.40
codegen_flags: <defaults>
</compile_context>

<pallas_src>
import math
import functools

import jax
import jax.numpy as jnp
from jax import lax
from jax.experimental import pallas as pl
from jax.experimental.pallas import tpu as pltpu


def _vmem_limit_bytes():
    """Generation-aware scoped-VMEM budget: leave >=16 MiB headroom below the
    physical capacity (v7x has only 64 MiB/TC) and cap at 100 MiB (v5e/v6e)."""
    phys = 64 * 1024 * 1024
    try:
        info = pltpu.get_tpu_info()
        phys = int(getattr(info, "vmem_capacity_bytes", phys))
    except Exception:
        pass
    return int(min(max(phys - 16 * 1024 * 1024, 32 * 1024 * 1024),
                   100 * 1024 * 1024))


_VMEM_LIMIT_BYTES = _vmem_limit_bytes()


def _round_up(x, m):
    return ((x + m - 1) // m) * m


def _pick_tile(dim, target, align):
    """Largest tile <= target that divides dim and is a multiple of align,
    falling back to the full dimension (always legal for BlockSpec)."""
    if dim <= target:
        return dim
    t = (target // align) * align
    while t >= align:
        if dim % t == 0:
            return t
        t -= align
    return dim


# ---------------------------------------------------------------------------
# Generic tiled matmul + bias:  y = x @ w + b   (used for c_attn and c_proj)
# ---------------------------------------------------------------------------
def _matmul_bias_kernel(x_ref, w_ref, b_ref, o_ref, acc_ref):
    k = pl.program_id(2)

    @pl.when(k == 0)
    def _init():
        acc_ref[...] = jnp.zeros_like(acc_ref)

    acc_ref[...] += jnp.dot(x_ref[...], w_ref[...],
                            preferred_element_type=jnp.float32)

    @pl.when(k == pl.num_programs(2) - 1)
    def _finalize():
        o_ref[...] = (acc_ref[...] + b_ref[...]).astype(o_ref.dtype)


def _matmul_bias(x, w, b):
    M, K = x.shape
    _, N = w.shape

    # M tiling: 512-row tiles (review item 5); pad M instead of ever taking a
    # whole huge dimension as one block (review item 9, v7x VMEM guard).
    align_m = 8 if jnp.dtype(x.dtype).itemsize >= 4 else 16
    tm = 512 if M >= 512 else _round_up(M, align_m)
    m_pad = _round_up(M, tm)
    if m_pad != M:
        x = jnp.pad(x, ((0, m_pad - M), (0, 0)))

    tk = _pick_tile(K, 512, 128)
    tn = _pick_tile(N, 512, 128)
    b2 = b.reshape(1, N)

    out = pl.pallas_call(
        _matmul_bias_kernel,
        out_shape=jax.ShapeDtypeStruct((m_pad, N), x.dtype),
        grid_spec=pltpu.PrefetchScalarGridSpec(
            num_scalar_prefetch=0,
            grid=(m_pad // tm, N // tn, K // tk),
            in_specs=[
                pl.BlockSpec((tm, tk), lambda i, j, k: (i, k)),   # x
                pl.BlockSpec((tk, tn), lambda i, j, k: (k, j)),   # w
                pl.BlockSpec((1, tn), lambda i, j, k: (0, j)),    # bias
            ],
            out_specs=pl.BlockSpec((tm, tn), lambda i, j, k: (i, j)),
            scratch_shapes=[pltpu.VMEM((tm, tn), jnp.float32)],
        ),
        compiler_params=pltpu.CompilerParams(
            dimension_semantics=("parallel", "parallel", "arbitrary"),
            vmem_limit_bytes=_VMEM_LIMIT_BYTES),
    )(x, w, b2)

    if m_pad != M:
        out = out[:M]
    return out


# ---------------------------------------------------------------------------
# Flash-style causal attention with heads batched inside the block.
#   q, k, v : (B, H, S, hd)   ->   out : (B, S, H*hd)   (heads merged in-kernel)
# ---------------------------------------------------------------------------
def _flash_attn_kernel(q_ref, k_ref, v_ref, o_ref, m_sc, l_sc, acc_sc, *,
                       num_heads, head_dim, block_q, block_k, sm_scale):
    qi = pl.program_id(1)
    ki = pl.program_id(2)

    @pl.when(ki == 0)
    def _init():
        m_sc[...] = jnp.full_like(m_sc, -jnp.inf)
        l_sc[...] = jnp.zeros_like(l_sc)
        acc_sc[...] = jnp.zeros_like(acc_sc)

    q_lo = qi * block_q                      # first q position in this tile
    q_hi = q_lo + (block_q - 1)              # last q position
    k_lo = ki * block_k                      # first k position
    k_hi = k_lo + (block_k - 1)              # last k position

    def process(masked):
        q = q_ref[0]                          # (H, bq, hd)
        if sm_scale != 1.0:
            q = q * sm_scale                  # scale q once (cheaper than s)
        k = k_ref[0]                          # (H, bk, hd)
        v = v_ref[0]                          # (H, bk, hd)

        # QK^T for all heads at once, contracting last dims (no transpose).
        s = jnp.einsum("hqd,hkd->hqk", q, k,
                       preferred_element_type=jnp.float32)       # (H, bq, bk)

        if masked:
            # Mask only on diagonal (partially-overlapping) tiles.
            q_pos = q_lo + lax.broadcasted_iota(
                jnp.int32, (block_q, block_k), 0)
            k_pos = k_lo + lax.broadcasted_iota(
                jnp.int32, (block_q, block_k), 1)
            s = jnp.where((q_pos >= k_pos)[None, :, :], s,
                          jnp.finfo(jnp.float32).min)

        m_prev = m_sc[...]                                        # (H, bq, 1)
        m_new = jnp.maximum(m_prev, jnp.max(s, axis=-1, keepdims=True))
        alpha = jnp.exp(m_prev - m_new)
        p = jnp.exp(s - m_new)                                    # (H, bq, bk)
        l_sc[...] = alpha * l_sc[...] + jnp.sum(p, axis=-1, keepdims=True)
        pv = jnp.einsum("hqk,hkd->hqd", p.astype(v.dtype), v,
                        preferred_element_type=jnp.float32)       # (H, bq, hd)
        acc_sc[...] = alpha * acc_sc[...] + pv
        m_sc[...] = m_new

    # Interior tiles: entirely at-or-below the diagonal -> no mask work.
    @pl.when(k_hi <= q_lo)
    def _interior():
        process(masked=False)

    # Diagonal tiles: partial overlap with the causal boundary -> masked.
    @pl.when(jnp.logical_and(k_hi > q_lo, k_lo <= q_hi))
    def _diagonal():
        process(masked=True)

    # (Tiles with k_lo > q_hi are fully masked: no compute; the K/V index_map
    #  clamp in the wrapper means no new DMA is issued for them either.)

    @pl.when(ki == pl.num_programs(2) - 1)
    def _finalize():
        inv_l = pl.reciprocal(l_sc[...], approx=False)            # (H, bq, 1)
        out = acc_sc[...] * inv_l                                 # (H, bq, hd)
        # Merge heads in-register (one lane-dim concatenate), then a single
        # lane-dense (bq, D) store -- no per-head masked partial stores.
        merged = jnp.concatenate([out[h] for h in range(num_heads)], axis=-1)
        o_ref[0] = merged.astype(o_ref.dtype)


def _flash_attention(q, k, v, sm_scale):
    B, H, S, hd = q.shape
    D = H * hd
    block_q = _pick_tile(S, 256, 8)    # fills the 256-wide MXU on v6e/v7x
    block_k = _pick_tile(S, 128, 8)
    n_q = S // block_q
    n_k = S // block_k

    def last_needed_kv_block(qi):
        # Last kv block index that intersects the causal region of q tile qi.
        return (qi * block_q + block_q - 1) // block_k

    def q_map(b, qi, ki):
        return (b, 0, qi, 0)

    def kv_map(b, qi, ki):
        # Clamp to the causal region: causally-dead steps reuse the resident
        # block, so no K/V DMA is issued for tiles that would never be used.
        return (b, 0, jnp.minimum(ki, last_needed_kv_block(qi)), 0)

    def o_map(b, qi, ki):
        return (b, qi, 0)

    kernel = functools.partial(
        _flash_attn_kernel,
        num_heads=H, head_dim=hd, block_q=block_q, block_k=block_k,
        sm_scale=sm_scale)

    # Megacore note (v7x): B and the q-tile axis are both "parallel"; for
    # small B the q axis carries the cross-TensorCore split.
    return pl.pallas_call(
        kernel,
        out_shape=jax.ShapeDtypeStruct((B, S, D), q.dtype),
        grid_spec=pltpu.PrefetchScalarGridSpec(
            num_scalar_prefetch=0,
            grid=(B, n_q, n_k),
            in_specs=[
                pl.BlockSpec((1, H, block_q, hd), q_map),          # q
                pl.BlockSpec((1, H, block_k, hd), kv_map),         # k
                pl.BlockSpec((1, H, block_k, hd), kv_map),         # v
            ],
            out_specs=pl.BlockSpec((1, block_q, D), o_map),
            scratch_shapes=[
                pltpu.VMEM((H, block_q, 1), jnp.float32),          # m (running max)
                pltpu.VMEM((H, block_q, 1), jnp.float32),          # l (running sum)
                pltpu.VMEM((H, block_q, hd), jnp.float32),         # acc
            ],
        ),
        compiler_params=pltpu.CompilerParams(
            dimension_semantics=("parallel", "parallel", "arbitrary"),
            vmem_limit_bytes=_VMEM_LIMIT_BYTES),
    )(q, k, v)


# ---------------------------------------------------------------------------
# Full AttentionLayer forward
# ---------------------------------------------------------------------------
def attention_layer_pallas(hidden_states, w_attn, b_attn, w_proj, b_proj,
                           num_heads, scale_attn_weights=True):
    B, S, D = hidden_states.shape
    assert D % num_heads == 0
    hd = D // num_heads
    sm_scale = (1.0 / math.sqrt(hd)) if scale_attn_weights else 1.0

    # c_attn: (B*S, D) @ (D, 3D) + b
    qkv = _matmul_bias(hidden_states.reshape(B * S, D), w_attn, b_attn)

    # Layout plumbing (plain XLA): split q/k/v and move heads before sequence.
    # TODO(synk): fold this permutation into the flash kernel's index_maps once
    #             in-register head-major relayout is robustly lowerable.
    qkv = qkv.reshape(B, S, 3, num_heads, hd)
    qkv = jnp.transpose(qkv, (2, 0, 3, 1, 4))          # (3, B, H, S, hd)
    q, k, v = qkv[0], qkv[1], qkv[2]

    # Flash attention; output already has heads merged: (B, S, D).
    attn = _flash_attention(q, k, v, sm_scale)

    # c_proj: (B*S, D) @ (D, D) + b
    out = _matmul_bias(attn.reshape(B * S, D), w_proj, b_proj)
    return out.reshape(B, S, D)


# ---------------------------------------------------------------------------
# Pure-JAX reference mirroring the PyTorch forward (eval mode)
# ---------------------------------------------------------------------------
def attention_layer_ref(hidden_states, w_attn, b_attn, w_proj, b_proj,
                        num_heads, scale_attn_weights=True):
    B, S, D = hidden_states.shape
    hd = D // num_heads
    qkv = hidden_states @ w_attn + b_attn
    q, k, v = jnp.split(qkv, 3, axis=-1)

    def split_heads(x):
        return x.reshape(B, S, num_heads, hd).transpose(0, 2, 1, 3)

    q, k, v = split_heads(q), split_heads(k), split_heads(v)
    w = jnp.einsum("bhqd,bhkd->bhqk", q, k)
    if scale_attn_weights:
        w = w / math.sqrt(hd)
    causal = jnp.tril(jnp.ones((S, S), dtype=bool))
    w = jnp.where(causal[None, None], w, jnp.finfo(w.dtype).min)
    w = jax.nn.softmax(w, axis=-1)
    score = jnp.einsum("bhqk,bhkd->bhqd", w, v)
    score = score.transpose(0, 2, 1, 3).reshape(B, S, D)
    return score @ w_proj + b_proj


if __name__ == "__main__":
    # Small config consistent with the module: hidden=32, heads=4, seq=8, batch=2.
    B, S, D = 2, 8, 32
    NUM_HEADS = 4

    key = jax.random.PRNGKey(0)
    k_x, k_wa, k_wp = jax.random.split(key, 3)

    hidden_states = jax.random.normal(k_x, (B, S, D), dtype=jnp.float32)
    # Conv1D init: weight ~ N(0, 0.02), bias = 0
    w_attn = 0.02 * jax.random.normal(k_wa, (D, 3 * D), dtype=jnp.float32)
    b_attn = jnp.zeros((3 * D,), dtype=jnp.float32)
    w_proj = 0.02 * jax.random.normal(k_wp, (D, D), dtype=jnp.float32)
    b_proj = jnp.zeros((D,), dtype=jnp.float32)

    out = attention_layer_pallas(hidden_states, w_attn, b_attn, w_proj, b_proj,
                                 NUM_HEADS, scale_attn_weights=True)
    out = jax.block_until_ready(out)

    ref = attention_layer_ref(hidden_states, w_attn, b_attn, w_proj, b_proj,
                              NUM_HEADS, scale_attn_weights=True)

    assert out.shape == (B, S, D)
    assert jnp.allclose(out, ref, atol=1e-3, rtol=1e-3), "mismatch vs reference"
    print("KERNEL_OK")
</pallas_src>

<mosaic_0001>
module attributes {stable_mosaic.version = 11 : i64} {
  func.func @_matmul_bias_kernel(%arg0: i32, %arg1: i32, %arg2: i32, %arg3: memref<16x32xf32, #tpu.memory_space<vmem>>, %arg4: memref<32x96xf32, #tpu.memory_space<vmem>>, %arg5: memref<1x96xf32, #tpu.memory_space<vmem>>, %arg6: memref<16x96xf32, #tpu.memory_space<vmem>>, %arg7: memref<16x96xf32, #tpu.memory_space<vmem>>) attributes {dimension_semantics = [#tpu.dimension_semantics<parallel>, #tpu.dimension_semantics<parallel>, #tpu.dimension_semantics<arbitrary>], iteration_bounds = array<i64: 1, 1, 1>, scalar_prefetch = 0 : i64, scratch_operands = 1 : i64, tpu.core_type = #tpu.core_type<tc>, window_params = [{transform_indices = @transform_0, window_bounds = array<i64: 16, 32>}, {transform_indices = @transform_1, window_bounds = array<i64: 32, 96>}, {transform_indices = @transform_2, window_bounds = array<i64: 1, 96>}, {transform_indices = @transform_3, window_bounds = array<i64: 16, 96>}]} {
    %c0_i32 = arith.constant 0 : i32
    %0 = arith.cmpi eq, %arg2, %c0_i32 : i32
    %1 = arith.extui %0 : i1 to i32
    %c0_i32_0 = arith.constant 0 : i32
    %2 = arith.cmpi ne, %1, %c0_i32_0 : i32
    scf.if %2 {
      %cst_10 = arith.constant 0.000000e+00 : f32
      %12 = vector.broadcast %cst_10 : f32 to vector<16x96xf32>
      %c0_11 = arith.constant 0 : index
      %c0_12 = arith.constant 0 : index
      %13 = vector.load %arg7[%c0_11, %c0_12] : memref<16x96xf32, #tpu.memory_space<vmem>>, vector<16x96xf32>
      tpu.vector_store %arg7[%c0_11, %c0_12], %12 {strides = array<i32>} : memref<16x96xf32, #tpu.memory_space<vmem>>, vector<16x96xf32>,
    } else {
    }
    %c0 = arith.constant 0 : index
    %c0_1 = arith.constant 0 : index
    %3 = vector.load %arg7[%c0, %c0_1] : memref<16x96xf32, #tpu.memory_space<vmem>>, vector<16x96xf32>
    %c0_2 = arith.constant 0 : index
    %c0_3 = arith.constant 0 : index
    %4 = vector.load %arg3[%c0_2, %c0_3] : memref<16x32xf32, #tpu.memory_space<vmem>>, vector<16x32xf32>
    %c0_4 = arith.constant 0 : index
    %c0_5 = arith.constant 0 : index
    %5 = vector.load %arg4[%c0_4, %c0_5] : memref<32x96xf32, #tpu.memory_space<vmem>>, vector<32x96xf32>
    %cst = arith.constant dense<0.000000e+00> : vector<16x96xf32>
    %6 = tpu.matmul %4, %5, %cst {dimension_numbers = #tpu.dot_dimension_numbers<[1], [0], [0], [1], [0, 0, 1, 1], [], []>} : vector<16x32xf32>, vector<32x96xf32>, vector<16x96xf32> -> vector<16x96xf32>
    %7 = arith.addf %3, %6 : vector<16x96xf32>
    %c0_6 = arith.constant 0 : index
    %c0_7 = arith.constant 0 : index
    %8 = vector.load %arg7[%c0_6, %c0_7] : memref<16x96xf32, #tpu.memory_space<vmem>>, vector<16x96xf32>
    tpu.vector_store %arg7[%c0_6, %c0_7], %7 {strides = array<i32>} : memref<16x96xf32, #tpu.memory_space<vmem>>, vector<16x96xf32>,
    %c0_i32_8 = arith.constant 0 : i32
    %9 = arith.cmpi eq, %arg2, %c0_i32_8 : i32
    %10 = arith.extui %9 : i1 to i32
    %c0_i32_9 = arith.constant 0 : i32
    %11 = arith.cmpi ne, %10, %c0_i32_9 : i32
    scf.if %11 {
      %c0_10 = arith.constant 0 : index
      %c0_11 = arith.constant 0 : index
      %12 = vector.load %arg7[%c0_10, %c0_11] : memref<16x96xf32, #tpu.memory_space<vmem>>, vector<16x96xf32>
      %c0_12 = arith.constant 0 : index
      %c0_13 = arith.constant 0 : index
      %13 = vector.load %arg5[%c0_12, %c0_13] : memref<1x96xf32, #tpu.memory_space<vmem>>, vector<1x96xf32>
      %14 = vector.broadcast %13 : vector<1x96xf32> to vector<16x96xf32>
      %15 = arith.addf %12, %14 : vector<16x96xf32>
      %c0_14 = arith.constant 0 : index
      %c0_15 = arith.constant 0 : index
      %16 = vector.load %arg6[%c0_14, %c0_15] : memref<16x96xf32, #tpu.memory_space<vmem>>, vector<16x96xf32>
      tpu.vector_store %arg6[%c0_14, %c0_15], %15 {strides = array<i32>} : memref<16x96xf32, #tpu.memory_space<vmem>>, vector<16x96xf32>,
    } else {
    }
    return
  }
  func.func @transform_0(%arg0: i32, %arg1: i32, %arg2: i32) -> (i32, i32) {
    %c0_i32 = arith.constant 0 : i32
    return %arg0, %arg2 : i32, i32
  }
  func.func @transform_1(%arg0: i32, %arg1: i32, %arg2: i32) -> (i32, i32) {
    %c0_i32 = arith.constant 0 : i32
    return %arg2, %arg1 : i32, i32
  }
  func.func @transform_2(%arg0: i32, %arg1: i32, %arg2: i32) -> (i32, i32) {
    %c0_i32 = arith.constant 0 : i32
    %c0_i32_0 = arith.constant 0 : i32
    return %c0_i32, %arg1 : i32, i32
  }
  func.func @transform_3(%arg0: i32, %arg1: i32, %arg2: i32) -> (i32, i32) {
    %c0_i32 = arith.constant 0 : i32
    return %arg0, %arg1 : i32, i32
  }
}

</mosaic_0001>

<llo_original>
// kernel: tpu_custom_call.1
$region0: #{tpu_custom_call.1}
  #allocation0 [shape = 'u32[]', space=smem, size = 0x4, offset = 0x4, fixed_abs, tag = 'smem constant byte address 0x4 - core index']
  #allocation1 [shape = 'u32[144,128]{1,0:T(1,128)}', space=vmem, size = 0x12000, scoped, tag = 'internal scratch']
  #allocation2 [shape = 'f32[16,96]{1,0:T(8,128)}', space=vmem, size = 0x2000, scoped, tag = 'scratch operand']
  %s0 = inlined_call_operand.hbm [shape: f32[16,32], index: 0, kind: input, shape index: {}]
  %s1 = inlined_call_operand.hbm [shape: f32[32,96], index: 1, kind: input, shape index: {}]
  %s2 = inlined_call_operand.vmem [shape: f32[1,96], index: 2, kind: input, shape index: {}]
  %s3 = inlined_call_operand.hbm [shape: f32[16,96], index: 3, kind: output, shape index: {}]
  %s4 = sld [smem:[#allocation0]]
  $region38: #{tpu_custom_call.1} parent=0
    _
  %s6 = ssub.s32 1, %s4
  %s7 = scalar_select 0, %s6, %s4
  $region1: #{tpu_custom_call.1} parent=0
    #allocation3 [shape = 'u8[8192]{0}', space=vmem, size = 0x2000, scoped, tag = 'input window, operand 0, single buffered']
    #allocation4 [shape = 's32[1]{0}', space=sflag, size = 0x4, scoped, tag = 'scoped memory for tpu_custom_call.1']
    #allocation5 [shape = 's32[1]{0}', space=sflag, size = 0x4, scoped, tag = 'scoped memory for tpu_custom_call.1']
    #allocation6 [shape = 'u8[16384]{0}', space=vmem, size = 0x4000, scoped, tag = 'input window, operand 1, single buffered']
    #allocation7 [shape = 's32[1]{0}', space=sflag, size = 0x4, scoped, tag = 'scoped memory for tpu_custom_call.1']
    #allocation8 [shape = 'u8[8192]{0}', space=vmem, size = 0x2000, scoped, tag = 'output window, operand 0, single buffered']
    %8 = vsyncpa [#allocation4], 0
    %9 = vsyncpa [#allocation7], 0
    %10 = vsyncpa [#allocation5], 0
    // Predicated region
    $region2: #{tpu_custom_call.1} parent=1 // pred_check
      _
    $region3: #{tpu_custom_call.1} parent=1 // pred_check_branch
      %12 = sbr.rel (0) target = $region5
    $region4: #{tpu_custom_call.1} parent=1 // pred_region
      %s14 = ssub.s32 256, 256
      %15 = vsyncadd [#allocation4], %s14
      %s16 = sshll.u32 [#allocation3], 4
      %s17 = int_to_ptr.vmem [resolvable:$true] %s16
      %22 = dma.hbm_to_vmem [thread:$0]  %s0, 256, %s17, [#allocation4], 128, 128, 8
    $region5: #{tpu_custom_call.1} parent=1 // pred_fallthru
      _
    // Predicated region
    $region6: #{tpu_custom_call.1} parent=1 // pred_check
      _
    $region7: #{tpu_custom_call.1} parent=1 // pred_check_branch
      %24 = sbr.rel (0) target = $region9
    $region8: #{tpu_custom_call.1} parent=1 // pred_region
      %s26 = ssub.s32 512, 512
      %27 = vsyncadd [#allocation7], %s26
      %s28 = sshll.u32 [#allocation6], 4
      %s29 = int_to_ptr.vmem [resolvable:$true] %s28
      %34 = dma.hbm_to_vmem [thread:$0]  %s1, 512, %s29, [#allocation7], 128, 128, 8
    $region9: #{tpu_custom_call.1} parent=1 // pred_fallthru
      _
    // Predicated region
    $region10: #{tpu_custom_call.1} parent=1 // pred_check
      _
    $region11: #{tpu_custom_call.1} parent=1 // pred_check_branch
      %36 = sbr.rel (0) target = $region13
    $region12: #{tpu_custom_call.1} parent=1 // pred_region
      _
    $region13: #{tpu_custom_call.1} parent=1 // pred_fallthru
      _
    // Predicated region
    $region14: #{tpu_custom_call.1} parent=1 // pred_check
      _
    $region15: #{tpu_custom_call.1} parent=1 // pred_check_branch
      %38 = sbr.rel (0) target = $region17
    $region16: #{tpu_custom_call.1} parent=1 // pred_region
      %39 = dma.done [#allocation4], 256
    $region17: #{tpu_custom_call.1} parent=1 // pred_fallthru
      _
    // Predicated region
    $region18: #{tpu_custom_call.1} parent=1 // pred_check
      _
    $region19: #{tpu_custom_call.1} parent=1 // pred_check_branch
      %41 = sbr.rel (0) target = $region21
    $region20: #{tpu_custom_call.1} parent=1 // pred_region
      %42 = dma.done [#allocation7], 512
    $region21: #{tpu_custom_call.1} parent=1 // pred_fallthru
      _
    %p43 = scmp.eq.s32.totalorder 0, 0
    // Predicated region
    $region22: #{tpu_custom_call.1} parent=1 // pred_check
      %p44 = pneg %p43
    $region23: #{tpu_custom_call.1} parent=1 // pred_check_branch
      %46 = sbr.rel (%p44) target = $region25
    $region24: #{tpu_custom_call.1} parent=1 // pred_region
      %vm47 = vcmask 785408
      %48 = vst.msk [vmem:[#allocation2] sm:$0xff] %vm47, 0.0
      %49 = vst.msk [vmem:[#allocation2 + $0x8] sm:$0xff] %vm47, 0.0
    $region25: #{tpu_custom_call.1} parent=1 // pred_fallthru
      _
    %v50 = vld [vmem:[#allocation2] sm:$0xff]
    %v51 = vld [vmem:[#allocation2 + $0x8] sm:$0xff]
    %v52 = vld [vmem:[#allocation3] sm:$0xff]
    %v53 = vld [vmem:[#allocation3 + $0x8] sm:$0xff]
    %v54 = vld [vmem:[#allocation6] sm:$0xff]
    %v55 = vld [vmem:[#allocation6 + $0x8] sm:$0xff]
    %v56 = vld [vmem:[#allocation6 + $0x10] sm:$0xff]
    %v57 = vld [vmem:[#allocation6 + $0x18] sm:$0xff]
    %vm58 = vcmask 261120
    %v60 = vsel %vm58, %v52, 0
    %v63 = vsel %vm58, %v53, 0
    %65 = vmatprep.subr.mxu0 0.0
    %66 = vmatpush1.msra.mxu0 %v54
    %67 = vmatprep.subr.mxu0 0.0
    %68 = vmatpush1.msra.mxu0 %v55
    %69 = vmatprep.subr.mxu0 0.0
    %70 = vmatpush1.msra.mxu0 %v56
    %71 = vmatprep.subr.mxu0 0.0
    %72 = vmatpush1.msra.mxu0 %v57
    %73 = vmatprep.subr.mxu0 0.0
    %74 = vmatpush1.msra.mxu0 0.0
    %75 = vmatprep.subr.mxu0 0.0
    %76 = vmatpush1.msra.mxu0 0.0
    %77 = vmatprep.subr.mxu0 0.0
    %78 = vmatpush1.msra.mxu0 0.0
    %79 = vmatprep.subr.mxu0 0.0
    %80 = vmatpush1.msra.mxu0 0.0
    %81 = vmatprep.subr.mxu0 0.0
    %82 = vmatpush1.msra.mxu0 0.0
    %83 = vmatprep.subr.mxu0 0.0
    %84 = vmatpush1.msra.mxu0 0.0
    %85 = vmatprep.subr.mxu0 0.0
    %86 = vmatpush1.msra.mxu0 0.0
    %87 = vmatprep.subr.mxu0 0.0
    %88 = vmatpush1.msra.mxu0 0.0
    %89 = vmatprep.subr.mxu0 0.0
    %90 = vmatpush1.msra.mxu0 0.0
    %91 = vmatprep.subr.mxu0 0.0
    %92 = vmatpush1.msra.mxu0 0.0
    %93 = vmatprep.subr.mxu0 0.0
    %94 = vmatpush1.msra.mxu0 0.0
    %95 = vmatprep.subr.mxu0 0.0
    %96 = vmatpush1.msra.mxu0 0.0
    %97 = vmatprep.subr.mxu0 0.0
    %98 = vmatpush1.msra.mxu0 0.0
    %99 = vmatprep.subr.mxu0 0.0
    %100 = vmatpush1.msra.mxu0 0.0
    %101 = vmatprep.subr.mxu0 0.0
    %102 = vmatpush1.msra.mxu0 0.0
    %103 = vmatprep.subr.mxu0 0.0
    %104 = vmatpush1.msra.mxu0 0.0
    %105 = vmatprep.subr.mxu0 0.0
    %106 = vmatpush1.msra.mxu0 0.0
    %107 = vmatprep.subr.mxu0 0.0
    %108 = vmatpush1.msra.mxu0 0.0
    %109 = vmatprep.subr.mxu0 0.0
    %110 = vmatpush1.msra.mxu0 0.0
    %111 = vmatprep.subr.mxu0 0.0
    %112 = vmatpush1.msra.mxu0 0.0
    %113 = vmatprep.subr.mxu0 0.0
    %114 = vmatpush1.msra.mxu0 0.0
    %115 = vmatprep.subr.mxu0 0.0
    %116 = vmatpush1.msra.mxu0 0.0
    %117 = vmatprep.subr.mxu0 0.0
    %118 = vmatpush1.msra.mxu0 0.0
    %119 = vmatprep.subr.mxu0 0.0
    %120 = vmatpush1.msra.mxu0 0.0
    %121 = vmatprep.subr.mxu0 0.0
    %122 = vmatpush1.msra.mxu0 0.0
    %123 = vmatprep.subr.mxu0 0.0
    %124 = vmatpush1.msra.mxu0 0.0
    %125 = vmatprep.subr.mxu0 0.0
    %126 = vmatpush1.msra.mxu0 0.0
    %127 = vmatprep.subr.mxu0 0.0
    %128 = vmatpush1.msra.mxu0 0.0
    %129 = vmatprep.mubr.f32.mxu0 0.0
    %130 = vmatmul.mubr.f32.gmra.mrb[0].mxu0 %v60
    %v131 = vpop.f32.mrb[0].mxu0
    %v132 = vadd.f32 0.0, %v131
    %v133 = vpop.f32.mrb[0].mxu0
    %134 = vmatprep.mubr.f32.mxu0 0.0
    %135 = vmatmul.mubr.f32.gmra.mrb[0].mxu0 %v63
    %v136 = vpop.f32.mrb[0].mxu0
    %v137 = vadd.f32 0.0, %v136
    %v138 = vpop.f32.mrb[0].mxu0
    %139 = vdwg.mxu0
    %v140 = vadd.f32 %v50, %v132
    %v141 = vadd.f32 %v51, %v137
    %vm142 = vcmask 785408
    %143 = vst.msk [vmem:[#allocation2] sm:$0xff] %vm142, %v140
    %144 = vst.msk [vmem:[#allocation2 + $0x8] sm:$0xff] %vm142, %v141
    // Predicated region
    $region26: #{tpu_custom_call.1} parent=1 // pred_check
      %p145 = pneg %p43
    $region27: #{tpu_custom_call.1} parent=1 // pred_check_branch
      %147 = sbr.rel (%p145) target = $region29
    $region28: #{tpu_custom_call.1} parent=1 // pred_region
      %v148 = vld [vmem:[#allocation2] sm:$0xff]
      %v149 = vld [vmem:[#allocation2 + $0x8] sm:$0xff]
      %v150 = vld [vmem:[%s2] sm:$0x1]
      %v152 = vlaneseq
      %v153 = vshrl.u32 %v152, 7
      %v154 = vsub.s32 0, %v153
      %v155 = vrot.slane %v150, %v154
      %v157 = vadd.f32 %v148, %v155
      %v158 = vadd.f32 %v149, %v155
      %159 = vst.msk [vmem:[#allocation8] sm:$0xff] %vm142, %v157
      %160 = vst.msk [vmem:[#allocation8 + $0x8] sm:$0xff] %vm142, %v158
    $region29: #{tpu_custom_call.1} parent=1 // pred_fallthru
      _
    // Predicated region
    $region30: #{tpu_custom_call.1} parent=1 // pred_check
      _
    $region31: #{tpu_custom_call.1} parent=1 // pred_check_branch
      %162 = sbr.rel (0) target = $region33
    $region32: #{tpu_custom_call.1} parent=1 // pred_region
      %s164 = ssub.s32 256, 256
      %165 = vsyncadd [#allocation5], %s164
      %s166 = sshll.u32 [#allocation8], 4
      %s167 = int_to_ptr.vmem [resolvable:$true] %s166
      %172 = dma.vmem_to_hbm [thread:$0]  %s167, 256, %s3, [#allocation5], 128, 128, 8
    $region33: #{tpu_custom_call.1} parent=1 // pred_fallthru
      _
    // Predicated region
    $region34: #{tpu_custom_call.1} parent=1 // pred_check
      _
    $region35: #{tpu_custom_call.1} parent=1 // pred_check_branch
      %174 = sbr.rel (0) target = $region37
    $region36: #{tpu_custom_call.1} parent=1 // pred_region
      %175 = dma.done [#allocation5], 256
    $region37: #{tpu_custom_call.1} parent=1 // pred_fallthru
      _
    %176 = vsyncpa [#allocation4], 1
    %177 = vsyncpa [#allocation7], 1
    %178 = vsyncpa [#allocation5], 1

</llo_original>
